<compile_context>
chip_gen: v5e
topology: v5e:2x2
jax: 0.10.0
libtpu: 0.0.40
codegen_flags: <defaults>
</compile_context>

<pallas_src>
import functools

import jax
import jax.numpy as jnp
from jax.experimental import pallas as pl
from jax.experimental.pallas import tpu as pltpu


def _round_up(x, m):
    return (x + m - 1) // m * m


def _triplet_kernel(margin_ref, a_ref, p_ref, n_ref, o_ref, *,
                    tb, n_rows, total_blocks, steps_per_core, needs_mask, eps):
    c = pl.program_id(0)          # "parallel" axis: TensorCore split (v7x)
    j = pl.program_id(1)          # "arbitrary" axis: row-block reduction stream

    @pl.when(j == 0)
    def _():
        o_ref[...] = jnp.zeros_like(o_ref)

    a = a_ref[...].astype(jnp.float32)
    p = p_ref[...].astype(jnp.float32)
    n = n_ref[...].astype(jnp.float32)

    # torch.pairwise_distance (p=2): ||x - y + eps||_2  (eps added to the diff)
    d_ap = jnp.sqrt(jnp.sum(jnp.square(a - p + eps), axis=-1, keepdims=True))
    d_an = jnp.sqrt(jnp.sum(jnp.square(a - n + eps), axis=-1, keepdims=True))

    margin = margin_ref[0]
    hinge = jnp.maximum(d_ap - d_an + margin, 0.0)            # (tb, 1)

    if needs_mask:
        # Global (unclamped) row-block index. Blocks with gi >= total_blocks are
        # duplicates created by the uneven 2-core split; their rows all fall
        # >= n_rows so the mask zeroes them out completely.
        gi = c * steps_per_core + j
        last = total_blocks - 1

        @pl.when(gi < last)
        def _():
            o_ref[...] += jnp.sum(hinge).reshape(o_ref.shape)

        @pl.when(gi >= last)
        def _():
            # Mask AFTER the hinge: any NaN/Inf coming from unspecified
            # out-of-bounds input rows is overwritten with 0 here.
            row = jax.lax.broadcasted_iota(jnp.int32, hinge.shape, 0) + gi * tb
            masked = jnp.where(row < n_rows, hinge, 0.0)
            o_ref[...] += jnp.sum(masked).reshape(o_ref.shape)
    else:
        o_ref[...] += jnp.sum(hinge).reshape(o_ref.shape)


def pallas_triplet_margin_loss(anchor, positive, negatives, margin, *,
                               eps=1e-6, max_rows_per_block=2048):
    """anchor/positive/negatives: (B, D) embeddings; margin: runtime scalar."""
    assert anchor.shape == positive.shape == negatives.shape
    B, D = anchor.shape

    itemsize = jnp.dtype(anchor.dtype).itemsize
    sublane = {4: 8, 2: 16, 1: 32}.get(itemsize, 8)

    # Row tile: as large as a conservative VMEM budget allows (3 inputs, double
    # buffered), multiple of the sublane packing, capped, never more rows than
    # needed for B. D stays whole so the last block dim is the full (lane-dense)
    # array dim and the (8,128) constraint holds for any D.
    VMEM_INPUT_BUDGET = 24 * 1024 * 1024          # safe on v5e/v6e (128 MiB) and v7x (64 MiB)
    per_row_bytes = 3 * 2 * D * itemsize
    tb_cap = max(sublane, (VMEM_INPUT_BUDGET // per_row_bytes) // sublane * sublane)
    cap = max(sublane, (max_rows_per_block // sublane) * sublane)
    tb = max(sublane, min(cap, tb_cap, _round_up(B, sublane)))

    total_blocks = (B + tb - 1) // tb
    num_cores = 2                                  # v7x: 2 TCs/chip; harmless on v5e/v6e
    steps_per_core = (total_blocks + num_cores - 1) // num_cores
    needs_mask = (B % tb != 0) or (total_blocks % num_cores != 0)

    margin = jnp.asarray(margin, jnp.float32).reshape(1)

    kernel = functools.partial(
        _triplet_kernel, tb=tb, n_rows=B, total_blocks=total_blocks,
        steps_per_core=steps_per_core, needs_mask=needs_mask, eps=float(eps))

    def row_map(c, j, m_ref):
        gi = c * steps_per_core + j
        # Clamp so duplicate steps from an uneven core split never DMA a fully
        # out-of-bounds block (their contribution is masked to 0 in the kernel).
        return (jnp.minimum(gi, total_blocks - 1), 0)

    row_spec = pl.BlockSpec((tb, D), row_map)

    # Explicit VMEM limit covering the double-buffered input tiles plus headroom
    # (v5e's 16 MiB scoped default would otherwise throttle large tiles).
    vmem_limit = int(max(3 * 2 * tb * D * itemsize + (4 << 20), 32 << 20))

    out = pl.pallas_call(
        kernel,
        out_shape=jax.ShapeDtypeStruct((num_cores, 1, 1), jnp.float32),
        grid_spec=pltpu.PrefetchScalarGridSpec(
            num_scalar_prefetch=1,                 # margin -> SMEM
            grid=(num_cores, steps_per_core),
            in_specs=[row_spec, row_spec, row_spec],
            out_specs=pl.BlockSpec((1, 1, 1), lambda c, j, m_ref: (c, 0, 0)),
        ),
        compiler_params=pltpu.CompilerParams(
            dimension_semantics=("parallel", "arbitrary"),
            vmem_limit_bytes=vmem_limit),
    )(margin, anchor, positive, negatives)

    # Combine the two per-core partial sums and take the batch mean.
    return jnp.sum(out) / jnp.float32(B)


def triplet_loss_forward(anchor, positive, negatives, num_cycle_of_target,
                         initial_margin=0.5, margin_increase_per_cycle=0.2,
                         max_margin=1.5):
    """Equivalent of TripletLoss.forward (dynamic-margin triplet loss)."""
    current_margin = jnp.minimum(
        jnp.float32(initial_margin)
        + jnp.float32(margin_increase_per_cycle)
        * jnp.asarray(num_cycle_of_target, jnp.float32),
        jnp.float32(max_margin))
    return pallas_triplet_margin_loss(anchor, positive, negatives, current_margin)


def _reference(anchor, positive, negatives, margin, eps=1e-6):
    d_ap = jnp.sqrt(jnp.sum(jnp.square(anchor - positive + eps), axis=-1))
    d_an = jnp.sqrt(jnp.sum(jnp.square(anchor - negatives + eps), axis=-1))
    return jnp.mean(jnp.maximum(d_ap - d_an + margin, 0.0))


if __name__ == "__main__":
    key = jax.random.PRNGKey(0)
    k1, k2, k3, k4, k5, k6 = jax.random.split(key, 6)

    # Small embedding shapes consistent with the module: batch=2, dim=32.
    B, D = 2, 32
    anchor = jax.random.normal(k1, (B, D), jnp.float32)
    positive = anchor + 0.1 * jax.random.normal(k2, (B, D), jnp.float32)
    negatives = jax.random.normal(k3, (B, D), jnp.float32)
    num_cycle = 3                           # margin = min(0.5 + 0.2*3, 1.5) = 1.1

    loss = triplet_loss_forward(anchor, positive, negatives, num_cycle)
    jax.block_until_ready(loss)
    ref = _reference(anchor, positive, negatives, min(0.5 + 0.2 * num_cycle, 1.5))
    assert loss.shape == ()
    assert jnp.allclose(loss, ref, rtol=1e-5, atol=1e-5), (loss, ref)

    # Second case: ragged tail handled purely by the in-kernel mask (no pad op).
    B2, D2 = 300, 128
    a2 = jax.random.normal(k4, (B2, D2), jnp.float32)
    p2 = a2 + 0.05 * jax.random.normal(k5, (B2, D2), jnp.float32)
    n2 = jax.random.normal(k6, (B2, D2), jnp.float32)
    ref2 = _reference(a2, p2, n2, 1.5)

    loss2 = triplet_loss_forward(a2, p2, n2, 10)      # margin capped at 1.5
    jax.block_until_ready(loss2)
    assert jnp.allclose(loss2, ref2, rtol=1e-5, atol=1e-5), (loss2, ref2)

    # Third case: force small row tiles to exercise the multi-step accumulation,
    # the uneven 2-core block split and the clamped duplicate block.
    loss3 = pallas_triplet_margin_loss(a2, p2, n2, jnp.float32(1.5),
                                       max_rows_per_block=64)
    jax.block_until_ready(loss3)
    assert jnp.allclose(loss3, ref2, rtol=1e-5, atol=1e-5), (loss3, ref2)

    print("KERNEL_OK")
</pallas_src>

<mosaic_0001>
module attributes {stable_mosaic.version = 11 : i64} {
  func.func @_triplet_kernel(%arg0: i32, %arg1: i32, %arg2: memref<1xf32, #tpu.memory_space<smem>>, %arg3: memref<8x32xf32, #tpu.memory_space<vmem>>, %arg4: memref<8x32xf32, #tpu.memory_space<vmem>>, %arg5: memref<8x32xf32, #tpu.memory_space<vmem>>, %arg6: memref<1x1x1xf32, #tpu.memory_space<vmem>>) attributes {dimension_semantics = [#tpu.dimension_semantics<parallel>, #tpu.dimension_semantics<arbitrary>], iteration_bounds = array<i64: 2, 1>, scalar_prefetch = 1 : i64, scratch_operands = 0 : i64, tpu.core_type = #tpu.core_type<tc>, window_params = [{transform_indices = @transform_0, window_bounds = array<i64: 8, 32>}, {transform_indices = @transform_1, window_bounds = array<i64: 8, 32>}, {transform_indices = @transform_2, window_bounds = array<i64: 8, 32>}, {transform_indices = @transform_3, window_bounds = array<i64: 1, 1, 1>}]} {
    %c0_i32 = arith.constant 0 : i32
    %0 = arith.cmpi eq, %arg1, %c0_i32 : i32
    %1 = arith.extui %0 : i1 to i32
    %c0_i32_0 = arith.constant 0 : i32
    %2 = arith.cmpi ne, %1, %c0_i32_0 : i32
    scf.if %2 {
      %cst_15 = arith.constant 0.000000e+00 : f32
      %34 = vector.broadcast %cst_15 : f32 to vector<1x1x1xf32>
      %c0_16 = arith.constant 0 : index
      %c0_17 = arith.constant 0 : index
      %c0_18 = arith.constant 0 : index
      %35 = vector.load %arg6[%c0_16, %c0_17, %c0_18] : memref<1x1x1xf32, #tpu.memory_space<vmem>>, vector<1x1x1xf32>
      tpu.vector_store %arg6[%c0_16, %c0_17, %c0_18], %34 {strides = array<i32>} : memref<1x1x1xf32, #tpu.memory_space<vmem>>, vector<1x1x1xf32>,
    } else {
    }
    %c0 = arith.constant 0 : index
    %c0_1 = arith.constant 0 : index
    %3 = vector.load %arg3[%c0, %c0_1] : memref<8x32xf32, #tpu.memory_space<vmem>>, vector<8x32xf32>
    %c0_2 = arith.constant 0 : index
    %c0_3 = arith.constant 0 : index
    %4 = vector.load %arg4[%c0_2, %c0_3] : memref<8x32xf32, #tpu.memory_space<vmem>>, vector<8x32xf32>
    %c0_4 = arith.constant 0 : index
    %c0_5 = arith.constant 0 : index
    %5 = vector.load %arg5[%c0_4, %c0_5] : memref<8x32xf32, #tpu.memory_space<vmem>>, vector<8x32xf32>
    %6 = arith.subf %3, %4 : vector<8x32xf32>
    %cst = arith.constant 9.99999997E-7 : f32
    %7 = vector.broadcast %cst : f32 to vector<8x32xf32>
    %8 = arith.addf %6, %7 : vector<8x32xf32>
    %9 = arith.mulf %8, %8 : vector<8x32xf32>
    %cst_6 = arith.constant dense<0.000000e+00> : vector<8xf32>
    %10 = vector.multi_reduction <add>, %9, %cst_6 [1] : vector<8x32xf32> to vector<8xf32>
    %11 = vector.shape_cast %10 : vector<8xf32> to vector<8x1xf32>
    %12 = math.sqrt %11 : vector<8x1xf32>
    %13 = arith.subf %3, %5 : vector<8x32xf32>
    %cst_7 = arith.constant 9.99999997E-7 : f32
    %14 = vector.broadcast %cst_7 : f32 to vector<8x32xf32>
    %15 = arith.addf %13, %14 : vector<8x32xf32>
    %16 = arith.mulf %15, %15 : vector<8x32xf32>
    %cst_8 = arith.constant dense<0.000000e+00> : vector<8xf32>
    %17 = vector.multi_reduction <add>, %16, %cst_8 [1] : vector<8x32xf32> to vector<8xf32>
    %18 = vector.shape_cast %17 : vector<8xf32> to vector<8x1xf32>
    %19 = math.sqrt %18 : vector<8x1xf32>
    %c0_9 = arith.constant 0 : index
    %20 = memref.load %arg2[%c0_9] : memref<1xf32, #tpu.memory_space<smem>>
    %21 = arith.subf %12, %19 : vector<8x1xf32>
    %22 = vector.broadcast %20 : f32 to vector<8x1xf32>
    %23 = arith.addf %21, %22 : vector<8x1xf32>
    %cst_10 = arith.constant 0.000000e+00 : f32
    %24 = vector.broadcast %cst_10 : f32 to vector<8x1xf32>
    %25 = arith.maximumf %23, %24 : vector<8x1xf32>
    %c1_i32 = arith.constant 1 : i32
    %26 = arith.muli %arg0, %c1_i32 : i32
    %27 = arith.addi %26, %arg1 : i32
    %c0_i32_11 = arith.constant 0 : i32
    %28 = arith.cmpi slt, %27, %c0_i32_11 : i32
    %29 = arith.extui %28 : i1 to i32
    %c0_i32_12 = arith.constant 0 : i32
    %30 = arith.cmpi ne, %29, %c0_i32_12 : i32
    scf.if %30 {
      %c0_15 = arith.constant 0 : index
      %c0_16 = arith.constant 0 : index
      %c0_17 = arith.constant 0 : index
      %34 = vector.load %arg6[%c0_15, %c0_16, %c0_17] : memref<1x1x1xf32, #tpu.memory_space<vmem>>, vector<1x1x1xf32>
      %35 = vector.shape_cast %25 : vector<8x1xf32> to vector<1x8x1xf32>
      %cst_18 = arith.constant dense<0.000000e+00> : vector<1xf32>
      %36 = vector.multi_reduction <add>, %35, %cst_18 [1, 2] : vector<1x8x1xf32> to vector<1xf32>
      %37 = vector.shape_cast %36 : vector<1xf32> to vector<1x1x1xf32>
      %38 = vector.extract %37[0, 0, 0] : f32 from vector<1x1x1xf32>
      %39 = vector.broadcast %38 : f32 to vector<1x1x1xf32>
      %40 = arith.addf %34, %39 : vector<1x1x1xf32>
      %c0_19 = arith.constant 0 : index
      %c0_20 = arith.constant 0 : index
      %c0_21 = arith.constant 0 : index
      %41 = vector.load %arg6[%c0_19, %c0_20, %c0_21] : memref<1x1x1xf32, #tpu.memory_space<vmem>>, vector<1x1x1xf32>
      tpu.vector_store %arg6[%c0_19, %c0_20, %c0_21], %40 {strides = array<i32>} : memref<1x1x1xf32, #tpu.memory_space<vmem>>, vector<1x1x1xf32>,
    } else {
    }
    %c0_i32_13 = arith.constant 0 : i32
    %31 = arith.cmpi sge, %27, %c0_i32_13 : i32
    %32 = arith.extui %31 : i1 to i32
    %c0_i32_14 = arith.constant 0 : i32
    %33 = arith.cmpi ne, %32, %c0_i32_14 : i32
    scf.if %33 {
      %34 = tpu.iota {dimensions = array<i32: 0>} : vector<8x1xi32>
      %c8_i32 = arith.constant 8 : i32
      %35 = arith.muli %27, %c8_i32 : i32
      %36 = vector.broadcast %35 : i32 to vector<8x1xi32>
      %37 = arith.addi %34, %36 : vector<8x1xi32>
      %c2_i32 = arith.constant 2 : i32
      %38 = vector.broadcast %c2_i32 : i32 to vector<8x1xi32>
      %39 = arith.cmpi slt, %37, %38 : vector<8x1xi32>
      %cst_15 = arith.constant 0.000000e+00 : f32
      %40 = vector.broadcast %cst_15 : f32 to vector<8x1xf32>
      %41 = arith.select %39, %25, %40 : vector<8x1xi1>, vector<8x1xf32>
      %c0_16 = arith.constant 0 : index
      %c0_17 = arith.constant 0 : index
      %c0_18 = arith.constant 0 : index
      %42 = vector.load %arg6[%c0_16, %c0_17, %c0_18] : memref<1x1x1xf32, #tpu.memory_space<vmem>>, vector<1x1x1xf32>
      %43 = vector.shape_cast %41 : vector<8x1xf32> to vector<1x8x1xf32>
      %cst_19 = arith.constant dense<0.000000e+00> : vector<1xf32>
      %44 = vector.multi_reduction <add>, %43, %cst_19 [1, 2] : vector<1x8x1xf32> to vector<1xf32>
      %45 = vector.shape_cast %44 : vector<1xf32> to vector<1x1x1xf32>
      %46 = vector.extract %45[0, 0, 0] : f32 from vector<1x1x1xf32>
      %47 = vector.broadcast %46 : f32 to vector<1x1x1xf32>
      %48 = arith.addf %42, %47 : vector<1x1x1xf32>
      %c0_20 = arith.constant 0 : index
      %c0_21 = arith.constant 0 : index
      %c0_22 = arith.constant 0 : index
      %49 = vector.load %arg6[%c0_20, %c0_21, %c0_22] : memref<1x1x1xf32, #tpu.memory_space<vmem>>, vector<1x1x1xf32>
      tpu.vector_store %arg6[%c0_20, %c0_21, %c0_22], %48 {strides = array<i32>} : memref<1x1x1xf32, #tpu.memory_space<vmem>>, vector<1x1x1xf32>,
    } else {
    }
    return
  }
  func.func @transform_0(%arg0: i32, %arg1: i32, %arg2: memref<1xf32, #tpu.memory_space<smem>>) -> (i32, i32) {
    %c1_i32 = arith.constant 1 : i32
    %0 = arith.muli %arg0, %c1_i32 : i32
    %1 = arith.addi %0, %arg1 : i32
    %c0_i32 = arith.constant 0 : i32
    %2 = arith.minsi %1, %c0_i32 : i32
    %c0_i32_0 = arith.constant 0 : i32
    %c0_i32_1 = arith.constant 0 : i32
    return %2, %c0_i32_0 : i32, i32
  }
  func.func @transform_1(%arg0: i32, %arg1: i32, %arg2: memref<1xf32, #tpu.memory_space<smem>>) -> (i32, i32) {
    %c1_i32 = arith.constant 1 : i32
    %0 = arith.muli %arg0, %c1_i32 : i32
    %1 = arith.addi %0, %arg1 : i32
    %c0_i32 = arith.constant 0 : i32
    %2 = arith.minsi %1, %c0_i32 : i32
    %c0_i32_0 = arith.constant 0 : i32
    %c0_i32_1 = arith.constant 0 : i32
    return %2, %c0_i32_0 : i32, i32
  }
  func.func @transform_2(%arg0: i32, %arg1: i32, %arg2: memref<1xf32, #tpu.memory_space<smem>>) -> (i32, i32) {
    %c1_i32 = arith.constant 1 : i32
    %0 = arith.muli %arg0, %c1_i32 : i32
    %1 = arith.addi %0, %arg1 : i32
    %c0_i32 = arith.constant 0 : i32
    %2 = arith.minsi %1, %c0_i32 : i32
    %c0_i32_0 = arith.constant 0 : i32
    %c0_i32_1 = arith.constant 0 : i32
    return %2, %c0_i32_0 : i32, i32
  }
  func.func @transform_3(%arg0: i32, %arg1: i32, %arg2: memref<1xf32, #tpu.memory_space<smem>>) -> (i32, i32, i32) {
    %c0_i32 = arith.constant 0 : i32
    %c0_i32_0 = arith.constant 0 : i32
    %c0_i32_1 = arith.constant 0 : i32
    return %arg0, %c0_i32, %c0_i32_0 : i32, i32, i32
  }
}

</mosaic_0001>

<llo_original>
// kernel: tpu_custom_call.1
$region0: #{tpu_custom_call.1}
  #allocation0 [shape = 'u32[]', space=smem, size = 0x4, offset = 0x4, fixed_abs, tag = 'smem constant byte address 0x4 - core index']
  #allocation1 [shape = 'u32[72,128]{1,0:T(1,128)}', space=vmem, size = 0x9000, scoped, tag = 'internal scratch']
  #allocation2 [shape = 's32[1]{0}', space=sflag, size = 0x4, scoped, tag = 'scoped memory for tpu_custom_call.1']
  #allocation3 [shape = 'f32[1]{0:T(128)S(6)}', space=smem, size = 0x200, scoped, tag = 'prefetched SMEM operand 0']
  %s0 = inlined_call_operand.<no memory space> [shape: f32[1], index: 0, kind: input, shape index: {}]
  %s1 = inlined_call_operand.vmem [shape: f32[2,32], index: 1, kind: input, shape index: {}]
  %s2 = inlined_call_operand.hbm [shape: f32[2,32], index: 2, kind: input, shape index: {}]
  %s3 = inlined_call_operand.hbm [shape: f32[2,32], index: 3, kind: input, shape index: {}]
  %s4 = inlined_call_operand.vmem [shape: f32[2,1,1], index: 4, kind: output, shape index: {}]
  %s5 = sld [smem:[#allocation0]]
  $region65: #{tpu_custom_call.1} parent=0
    _
  %s7 = ssub.s32 1, %s5
  %s8 = scalar_select 0, %s7, %s5
  %9 = sst [smem:[#allocation3]] %s0
  $region1: #{tpu_custom_call.1} parent=0
    #allocation4 [shape = 'u8[8192]{0}', space=vmem, size = 0x2000, scoped, tag = 'input window, operand 2']
    #allocation5 [shape = 's32[2]{0}', space=sflag, size = 0x8, scoped, tag = 'scoped memory for tpu_custom_call.1']
    #allocation6 [shape = 'u8[8192]{0}', space=vmem, size = 0x2000, scoped, tag = 'input window, operand 3']
    #allocation7 [shape = 's32[2]{0}', space=sflag, size = 0x8, scoped, tag = 'scoped memory for tpu_custom_call.1']
    %10 = vsyncpa [#allocation5], 0
    %s11 = scalar_lea.sflag [#allocation5], 1
    %12 = vsyncpa %s11, 0
    %13 = vsyncpa [#allocation7], 0
    %s14 = scalar_lea.sflag [#allocation7], 1
    %15 = vsyncpa %s14, 0
    loop: start=0, step=1, limit=4
    $region2: #{tpu_custom_call.1} parent=1 // loop_pre_header
      _
    $region3: #{tpu_custom_call.1} parent=1 // loop_header
      %s17 = sphi 0, %s21
      %p18 = scmp.ge.s32.totalorder %s17, 4
      %s24 = sphi 0, %s36
      %s25 = sphi 0, %s32
      %s26 = sphi 0, %s24
      %s27 = sphi 0, %s25
      %s28 = sphi 0, %s26
      %s29 = sphi 0, %s27
      %s45 = sphi 0, %s47
      %s48 = sphi 0, %s45
      %s49 = sphi 0, %s48
      %s65 = sphi 0, %s49
      %s77 = sphi 0, %s79
      %s80 = sphi 0, %s77
      %s81 = sphi 0, %s80
      %s97 = sphi 0, %s81
      %s109 = sphi 0, %s111
      %s112 = sphi 0, %s109
      %s113 = sphi 0, %s112
      %s129 = sphi 0, %s113
      %s135 = sphi 0, %s137
      %s138 = sphi 0, %s135
      %s139 = sphi 0, %s138
      %s155 = sphi 0, %s139
    $region4: #{tpu_custom_call.1} parent=1 // loop_header_branch
      %20 = sbr.rel (%p18) target = $region8
    $region5: #{tpu_custom_call.1} parent=1 // loop_body
      %s22 = ssub.s32 %s17, 1
      %s23 = ssub.s32 %s17, 2
      %s30 = sadd.s32 1, %s25
      %p31 = scmp.ge.s32.totalorder %s30, 1
      %s32 = scalar_select %p31, 0, %s30
      %s33 = sadd.s32 1, %s24
      %s34 = scalar_select %p31, %s33, %s24
      %p35 = scmp.ge.s32.totalorder %s34, 2
      %s36 = scalar_select %p35, 0, %s34
      %s37 = sadd.s32 %s24, %s25
      %p38 = scmp.lt.s32.totalorder %s37, 0
      %s39 = scalar_select %p38, %s37, 0
      %s40 = sadd.s32 %s36, %s32
      %p41 = scmp.lt.s32.totalorder %s40, 0
      %s42 = scalar_select %p41, %s40, 0
      %s43 = ssub.s32 %s39, %s42
      %p44 = scmp.eq.s32.totalorder %s43, 0
      %s46 = sadd.s32 %s45, 1
      %s47 = scalar_select %p44, %s45, %s46
      %p50 = pneg %p44
      %p51 = scmp.eq.s32.totalorder %s17, 1
      %p52 = por %p50, %p51
      %p53 = scmp.ne.s32.totalorder %s45, %s48
      %p54 = scmp.eq.s32.totalorder %s17, 0
      %p55 = por %p53, %p54
      %p56 = scmp.ne.s32.totalorder %s45, %s48
      %p57 = scmp.eq.s32.totalorder %s22, 1
      %p58 = por %p56, %p57
      %p59 = scmp.ne.s32.totalorder %s48, %s49
      %p60 = scmp.eq.s32.totalorder %s22, 0
      %p61 = por %p59, %p60
      %p62 = scmp.ne.s32.totalorder %s48, %s49
      %p63 = scmp.eq.s32.totalorder %s23, 1
      %p64 = por %p62, %p63
      %p66 = scmp.ne.s32.totalorder %s49, %s65
      %p67 = scmp.eq.s32.totalorder %s23, 0
      %p68 = por %p66, %p67
      %s69 = sadd.s32 %s24, %s25
      %p70 = scmp.lt.s32.totalorder %s69, 0
      %s71 = scalar_select %p70, %s69, 0
      %s72 = sadd.s32 %s36, %s32
      %p73 = scmp.lt.s32.totalorder %s72, 0
      %s74 = scalar_select %p73, %s72, 0
      %s75 = ssub.s32 %s71, %s74
      %p76 = scmp.eq.s32.totalorder %s75, 0
      %s78 = sadd.s32 %s77, 1
      %s79 = scalar_select %p76, %s77, %s78
      %p82 = pneg %p76
      %p83 = scmp.eq.s32.totalorder %s17, 1
      %p84 = por %p82, %p83
      %p85 = scmp.ne.s32.totalorder %s77, %s80
      %p86 = scmp.eq.s32.totalorder %s17, 0
      %p87 = por %p85, %p86
      %p88 = scmp.ne.s32.totalorder %s77, %s80
      %p89 = scmp.eq.s32.totalorder %s22, 1
      %p90 = por %p88, %p89
      %p91 = scmp.ne.s32.totalorder %s80, %s81
      %p92 = scmp.eq.s32.totalorder %s22, 0
      %p93 = por %p91, %p92
      %p94 = scmp.ne.s32.totalorder %s80, %s81
      %p95 = scmp.eq.s32.totalorder %s23, 1
      %p96 = por %p94, %p95
      %p98 = scmp.ne.s32.totalorder %s81, %s97
      %p99 = scmp.eq.s32.totalorder %s23, 0
      %p100 = por %p98, %p99
      %s101 = sadd.s32 %s24, %s25
      %p102 = scmp.lt.s32.totalorder %s101, 0
      %s103 = scalar_select %p102, %s101, 0
      %s104 = sadd.s32 %s36, %s32
      %p105 = scmp.lt.s32.totalorder %s104, 0
      %s106 = scalar_select %p105, %s104, 0
      %s107 = ssub.s32 %s103, %s106
      %p108 = scmp.eq.s32.totalorder %s107, 0
      %s110 = sadd.s32 %s109, 1
      %s111 = scalar_select %p108, %s109, %s110
      %p114 = pneg %p108
      %p115 = scmp.eq.s32.totalorder %s17, 1
      %p116 = por %p114, %p115
      %p117 = scmp.ne.s32.totalorder %s109, %s112
      %p118 = scmp.eq.s32.totalorder %s17, 0
      %p119 = por %p117, %p118
      %p120 = scmp.ne.s32.totalorder %s109, %s112
      %p121 = scmp.eq.s32.totalorder %s22, 1
      %p122 = por %p120, %p121
      %p123 = scmp.ne.s32.totalorder %s112, %s113
      %p124 = scmp.eq.s32.totalorder %s22, 0
      %p125 = por %p123, %p124
      %p126 = scmp.ne.s32.totalorder %s112, %s113
      %p127 = scmp.eq.s32.totalorder %s23, 1
      %p128 = por %p126, %p127
      %p130 = scmp.ne.s32.totalorder %s113, %s129
      %p131 = scmp.eq.s32.totalorder %s23, 0
      %p132 = por %p130, %p131
      %s133 = ssub.s32 %s24, %s36
      %p134 = scmp.eq.s32.totalorder %s133, 0
      %s136 = sadd.s32 %s135, 1
      %s137 = scalar_select %p134, %s135, %s136
      %p140 = pneg %p134
      %p141 = scmp.eq.s32.totalorder %s17, 1
      %p142 = por %p140, %p141
      %p143 = scmp.ne.s32.totalorder %s135, %s138
      %p144 = scmp.eq.s32.totalorder %s17, 0
      %p145 = por %p143, %p144
      %p146 = scmp.ne.s32.totalorder %s135, %s138
      %p147 = scmp.eq.s32.totalorder %s22, 1
      %p148 = por %p146, %p147
      %p149 = scmp.ne.s32.totalorder %s138, %s139
      %p150 = scmp.eq.s32.totalorder %s22, 0
      %p151 = por %p149, %p150
      %p152 = scmp.ne.s32.totalorder %s138, %s139
      %p153 = scmp.eq.s32.totalorder %s23, 1
      %p154 = por %p152, %p153
      %p156 = scmp.ne.s32.totalorder %s139, %s155
      %p157 = scmp.eq.s32.totalorder %s23, 0
      %p158 = por %p156, %p157
      %p159 = scmp.le.s32.totalorder 1, %s17
      %p160 = scmp.lt.s32.totalorder %s17, 3
      %p161 = pnand %p159, %p160
      %p162 = pneg %p161
      // Predicated region
      $region9: #{tpu_custom_call.1} parent=5 // pred_check
        _
      $region10: #{tpu_custom_call.1} parent=5 // pred_check_branch
        %164 = sbr.rel (%p161) target = $region12
      $region11: #{tpu_custom_call.1} parent=5 // pred_region
        %s165 = ssub.s32 %s17, 1
      $region12: #{tpu_custom_call.1} parent=5 // pred_fallthru
        _
      %p166 = scmp.lt.s32.totalorder %s17, 2
      // Predicated region
      $region13: #{tpu_custom_call.1} parent=5 // pred_check
        %p167 = pneg %p166
      $region14: #{tpu_custom_call.1} parent=5 // pred_check_branch
        %169 = sbr.rel (%p167) target = $region16
      $region15: #{tpu_custom_call.1} parent=5 // pred_region
        // Predicated region
        $region17: #{tpu_custom_call.1} parent=15 // pred_check
          %p170 = pneg %p55
        $region18: #{tpu_custom_call.1} parent=15 // pred_check_branch
          %172 = sbr.rel (%p170) target = $region20
        $region19: #{tpu_custom_call.1} parent=15 // pred_region
          %s173 = sadd.s32 %s24, %s25
          %p174 = scmp.lt.s32.totalorder %s173, 0
          %s175 = scalar_select %p174, %s173, 0
          %s176 = smul.u32 4, %s175
          %s177 = ssub.s32 1, %s176
          %s178 = smul.u32 2, %s177
          %p179 = scmp.lt.s32.totalorder %s176, 0
          %s180 = scalar_select %p179, %s176, 0
          %s181 = smul.addr %s180, 2
          %s182 = scalar_lea.vmem %s1, %s181
          %s183 = sadd.s32 %s24, %s25
          %p184 = scmp.lt.s32.totalorder %s183, 0
          %s185 = scalar_select %p184, %s183, 0
          %s186 = smul.u32 4, %s185
          %s187 = ssub.s32 1, %s186
          %s188 = smul.u32 2, %s187
        $region20: #{tpu_custom_call.1} parent=15 // pred_fallthru
          _
        // Predicated region
        $region21: #{tpu_custom_call.1} parent=15 // pred_check
          %p189 = pneg %p87
        $region22: #{tpu_custom_call.1} parent=15 // pred_check_branch
          %191 = sbr.rel (%p189) target = $region24
        $region23: #{tpu_custom_call.1} parent=15 // pred_region
          %s192 = sand.u32 %s77, 1
          %s193 = scalar_lea.sflag [#allocation5], %s192
          %s194 = sand.u32 %s77, 1
          %s195 = smul.addr %s194, 8
          %s196 = scalar_lea.vmem [#allocation4], %s195
          %s197 = sadd.s32 %s24, %s25
          %p198 = scmp.lt.s32.totalorder %s197, 0
          %s199 = scalar_select %p198, %s197, 0
          %s200 = smul.u32 4, %s199
          %s201 = ssub.s32 1, %s200
          %s202 = smul.u32 2, %s201
          %s203 = ssub.s32 8, %s202
          %s204 = sshll.u32 %s203, 4
          %205 = vsyncadd %s193, %s204
          %p206 = scmp.ne.s32.totalorder 0, %s202
          %s207 = smul.addr %s200, 2
          %s208 = scalar_lea.hbm %s2, %s207
          %s209 = smul.u32 2, %s201
          %s210 = sshll.u32 %s208, 4
          %s211 = int_to_ptr.hbm [resolvable:$true] %s210
          %s212 = sshll.u32 %s196, 4
          %s213 = int_to_ptr.vmem [resolvable:$true] %s212
          %s214 = sshll.u32 %s209, 4
          %218 = dma.hbm_to_vmem [thread:$0]  (%p206), %s211, %s214, %s213, %s193, 32, 32, 2
        $region24: #{tpu_custom_call.1} parent=15 // pred_fallthru
          _
        // Predicated region
        $region25: #{tpu_custom_call.1} parent=15 // pred_check
          %p219 = pneg %p119
        $region26: #{tpu_custom_call.1} parent=15 // pred_check_branch
          %221 = sbr.rel (%p219) target = $region28
        $region27: #{tpu_custom_call.1} parent=15 // pred_region
          %s222 = sand.u32 %s109, 1
          %s223 = scalar_lea.sflag [#allocation7], %s222
          %s224 = sand.u32 %s109, 1
          %s225 = smul.addr %s224, 8
          %s226 = scalar_lea.vmem [#allocation6], %s225
          %s227 = sadd.s32 %s24, %s25
          %p228 = scmp.lt.s32.totalorder %s227, 0
          %s229 = scalar_select %p228, %s227, 0
          %s230 = smul.u32 4, %s229
          %s231 = ssub.s32 1, %s230
          %s232 = smul.u32 2, %s231
          %s233 = ssub.s32 8, %s232
          %s234 = sshll.u32 %s233, 4
          %235 = vsyncadd %s223, %s234
          %p236 = scmp.ne.s32.totalorder 0, %s232
          %s237 = smul.addr %s230, 2
          %s238 = scalar_lea.hbm %s3, %s237
          %s239 = smul.u32 2, %s231
          %s240 = sshll.u32 %s238, 4
          %s241 = int_to_ptr.hbm [resolvable:$true] %s240
          %s242 = sshll.u32 %s226, 4
          %s243 = int_to_ptr.vmem [resolvable:$true] %s242
          %s244 = sshll.u32 %s239, 4
          %248 = dma.hbm_to_vmem [thread:$0]  (%p236), %s241, %s244, %s243, %s223, 32, 32, 2
        $region28: #{tpu_custom_call.1} parent=15 // pred_fallthru
          _
      $region16: #{tpu_custom_call.1} parent=5 // pred_fallthru
        _
      %p249 = scmp.le.s32.totalorder 1, %s17
      %p250 = scmp.lt.s32.totalorder %s17, 3
      %p251 = pnand %p249, %p250
      %p252 = pneg %p251
      // Predicated region
      $region29: #{tpu_custom_call.1} parent=5 // pred_check
        _
      $region30: #{tpu_custom_call.1} parent=5 // pred_check_branch
        %254 = sbr.rel (%p251) target = $region32
      $region31: #{tpu_custom_call.1} parent=5 // pred_region
        %s255 = ssub.s32 %s17, 1
        %s256 = sand.u32 %s80, 1
        %s257 = scalar_lea.sflag [#allocation5], %s256
        %s258 = sand.u32 %s80, 1
        %s259 = smul.addr %s258, 8
        %s260 = scalar_lea.vmem [#allocation4], %s259
        // Predicated region
        $region33: #{tpu_custom_call.1} parent=31 // pred_check
          %p261 = pneg %p93
        $region34: #{tpu_custom_call.1} parent=31 // pred_check_branch
          %263 = sbr.rel (%p261) target = $region36
        $region35: #{tpu_custom_call.1} parent=31 // pred_region
          %265 = dma.done %s257, 128
        $region36: #{tpu_custom_call.1} parent=31 // pred_fallthru
          _
        %s266 = sand.u32 %s112, 1
        %s267 = scalar_lea.sflag [#allocation7], %s266
        %s268 = sand.u32 %s112, 1
        %s269 = smul.addr %s268, 8
        %s270 = scalar_lea.vmem [#allocation6], %s269
        // Predicated region
        $region37: #{tpu_custom_call.1} parent=31 // pred_check
          %p271 = pneg %p125
        $region38: #{tpu_custom_call.1} parent=31 // pred_check_branch
          %273 = sbr.rel (%p271) target = $region40
        $region39: #{tpu_custom_call.1} parent=31 // pred_region
          %275 = dma.done %s267, 128
        $region40: #{tpu_custom_call.1} parent=31 // pred_fallthru
          _
        %s276 = sadd.s32 %s26, %s27
        %p277 = scmp.lt.s32.totalorder %s276, 0
        %s278 = scalar_select %p277, %s276, 0
        %s279 = smul.u32 4, %s278
        %s280 = ssub.s32 1, %s279
        %s281 = smul.u32 2, %s280
        %p282 = scmp.lt.s32.totalorder %s279, 0
        %s283 = scalar_select %p282, %s279, 0
        %s284 = smul.addr %s283, 2
        %s285 = scalar_lea.vmem %s1, %s284
        %p286 = pneg %p61
        %p287 = pneg %p58
        %s288 = sand.u32 %s80, 1
        %s289 = scalar_lea.sflag [#allocation5], %s288
        %s290 = sand.u32 %s80, 1
        %s291 = smul.addr %s290, 8
        %s292 = scalar_lea.vmem [#allocation4], %s291
        %p293 = pneg %p93
        %p294 = pneg %p90
        %s295 = sand.u32 %s112, 1
        %s296 = scalar_lea.sflag [#allocation7], %s295
        %s297 = sand.u32 %s112, 1
        %s298 = smul.addr %s297, 8
        %s299 = scalar_lea.vmem [#allocation6], %s298
        %p300 = pneg %p125
        %p301 = pneg %p122
        %p302 = pneg %p151
        %p303 = pneg %p148
        %p304 = scmp.lt.s32.totalorder %s26, 1
        %s305 = scalar_select %p304, %s26, 1
        %s306 = scalar_lea.vmem %s4, %s305
        %s307 = sadd.s32 %s26, %s27
        %p308 = scmp.lt.s32.totalorder %s307, 0
        %s309 = scalar_select %p308, %s307, 0
        %s310 = smul.u32 4, %s309
        %s311 = ssub.s32 1, %s310
        %s312 = smul.u32 2, %s311
        %p313 = scmp.lt.s32.totalorder %s310, 0
        %s314 = scalar_select %p313, %s310, 0
        %s315 = smul.addr %s314, 2
        %s316 = scalar_lea.vmem %s1, %s315
        %s317 = sadd.s32 %s26, %s27
        %p318 = scmp.lt.s32.totalorder %s317, 0
        %s319 = scalar_select %p318, %s317, 0
        %s320 = smul.u32 4, %s319
        %s321 = ssub.s32 1, %s320
        %s322 = smul.u32 2, %s321
        %s323 = sadd.s32 %s26, %s27
        %p324 = scmp.lt.s32.totalorder %s323, 0
        %s325 = scalar_select %p324, %s323, 0
        %s326 = smul.u32 4, %s325
        %s327 = ssub.s32 1, %s326
        %s328 = smul.u32 2, %s327
        %s329 = sadd.s32 %s26, %s27
        %p330 = scmp.lt.s32.totalorder %s329, 0
        %s331 = scalar_select %p330, %s329, 0
        %s332 = smul.u32 4, %s331
        %s333 = ssub.s32 1, %s332
        %s334 = smul.u32 2, %s333
        %p335 = scmp.lt.s32.totalorder %s26, 1
        %s336 = scalar_select %p335, %s26, 1
        %s337 = scalar_lea.vmem %s4, %s336
        %p338 = scmp.eq.s32.totalorder %s27, 0
        // Predicated region
        $region41: #{tpu_custom_call.1} parent=31 // pred_check
          %p339 = pneg %p338
        $region42: #{tpu_custom_call.1} parent=31 // pred_check_branch
          %341 = sbr.rel (%p339) target = $region44
        $region43: #{tpu_custom_call.1} parent=31 // pred_region
          %vm342 = vcmask 0
          %343 = vst.msk [vmem:[%s337] sm:$0x1] %vm342, 0.0
        $region44: #{tpu_custom_call.1} parent=31 // pred_fallthru
          _
        %v344 = vld [vmem:[%s316] sm:$0xff]
        %v345 = vld [vmem:[%s260] sm:$0xff]
        %v346 = vld [vmem:[%s270] sm:$0xff]
        %v347 = vsub.f32 %v344, %v345
        %v348 = vadd.f32 %v347, 1e-06
        %v349 = vmul.f32 %v348, %v348
        %vm350 = vcmask 261120
        %v351 = vsel %vm350, %v349, 0.0
        %352 = vadd.xlane.f32.xlu0 %v351
        %v353 = vpop.xlane.xlu0 %352
        %v354 = vrsqrt.pop %v353
        %v355 = vmul.f32 %v354, %v353
        %v356 = vmul.f32 %v355, %v354
        %v357 = vmul.f32 0.5, %v356
        %v358 = vsub.f32 1.5, %v357
        %v359 = vmul.f32 %v354, %v358
        %v360 = vmul.f32 %v353, %v359
        %vm361 = vcmp.eq.f32.partialorder %v353, inf
        %v362 = vsel %vm361, %v353, %v360
        %vm363 = vcmp.eq.f32.partialorder %v353, 0.0
        %v364 = vand.u32 %v353, 2147483648
        %v365 = vsel %vm363, %v364, %v362
        %v366 = vsub.f32 %v344, %v346
        %v367 = vadd.f32 %v366, 1e-06
        %v368 = vmul.f32 %v367, %v367
        %v369 = vsel %vm350, %v368, 0.0
        %370 = vadd.xlane.f32.xlu0 %v369
        %v371 = vpop.xlane.xlu0 %370
        %v372 = vrsqrt.pop %v371
        %v373 = vmul.f32 %v372, %v371
        %v374 = vmul.f32 %v373, %v372
        %v375 = vmul.f32 0.5, %v374
        %v376 = vsub.f32 1.5, %v375
        %v377 = vmul.f32 %v372, %v376
        %v378 = vmul.f32 %v371, %v377
        %vm379 = vcmp.eq.f32.partialorder %v371, inf
        %v380 = vsel %vm379, %v371, %v378
        %vm381 = vcmp.eq.f32.partialorder %v371, 0.0
        %v382 = vand.u32 %v371, 2147483648
        %v383 = vsel %vm381, %v382, %v380
        %s384 = sld [smem:[#allocation3]]
        %v385 = vsub.f32 %v365, %v383
        %v386 = vstv %s384
        %v387 = vadd.f32 %v385, %v386
        %v388 = vmax.f32 %v387, 0.0
        %s389 = sadd.s32 %s26, %s27
        %p390 = scmp.lt.s32.totalorder %s389, 0
        // Predicated region
        $region45: #{tpu_custom_call.1} parent=31 // pred_check
          %p391 = pneg %p390
        $region46: #{tpu_custom_call.1} parent=31 // pred_check_branch
          %393 = sbr.rel (%p391) target = $region48
        $region47: #{tpu_custom_call.1} parent=31 // pred_region
          %v394 = vld [vmem:[%s337] sm:$0x1]
          %vm395 = vcmask 7168
          %v396 = vsel %vm395, %v388, 0.0
          %397 = vadd.xlane.f32.xlu0 %v396
          %v398 = vpop.xlane.xlu0 %397
          %v399 = vrot.slane %v398, 4
          %v400 = vadd.f32 %v398, %v399
          %v401 = vrot.slane %v400, 2
          %v402 = vadd.f32 %v400, %v401
          %v403 = vrot.slane %v402, 1
          %v404 = vadd.f32 %v402, %v403
          %s405 = vtos %v404
          %v406 = vstv %s405
          %v407 = vadd.f32 %v394, %v406
          %vm408 = vcmask 0
          %409 = vst.msk [vmem:[%s337] sm:$0x1] %vm408, %v407
        $region48: #{tpu_custom_call.1} parent=31 // pred_fallthru
          _
        %p410 = scmp.ge.s32.totalorder %s389, 0
        // Predicated region
        $region49: #{tpu_custom_call.1} parent=31 // pred_check
          %p411 = pneg %p410
        $region50: #{tpu_custom_call.1} parent=31 // pred_check_branch
          %413 = sbr.rel (%p411) target = $region52
        $region51: #{tpu_custom_call.1} parent=31 // pred_region
          %v414 = vlaneseq
          %v415 = vshrl.u32 %v414, 7
          %s416 = smul.u32 %s389, 8
          %v417 = vstv %s416
          %v418 = vadd.s32 %v415, %v417
          %vm419 = vcmp.lt.s32.totalorder %v418, 2
          %v420 = vsel %vm419, %v388, 0.0
          %v421 = vld [vmem:[%s337] sm:$0x1]
          %vm422 = vcmask 7168
          %v423 = vsel %vm422, %v420, 0.0
          %424 = vadd.xlane.f32.xlu0 %v423
          %v425 = vpop.xlane.xlu0 %424
          %v426 = vrot.slane %v425, 4
          %v427 = vadd.f32 %v425, %v426
          %v428 = vrot.slane %v427, 2
          %v429 = vadd.f32 %v427, %v428
          %v430 = vrot.slane %v429, 1
          %v431 = vadd.f32 %v429, %v430
          %s432 = vtos %v431
          %v433 = vstv %s432
          %v434 = vadd.f32 %v421, %v433
          %vm435 = vcmask 0
          %436 = vst.msk [vmem:[%s337] sm:$0x1] %vm435, %v434
        $region52: #{tpu_custom_call.1} parent=31 // pred_fallthru
          _
        %p437 = scmp.lt.s32.totalorder %s26, 1
        %s438 = scalar_select %p437, %s26, 1
        %s439 = scalar_lea.vmem %s4, %s438
        // Predicated region
        $region53: #{tpu_custom_call.1} parent=31 // pred_check
          %p440 = pneg %p148
        $region54: #{tpu_custom_call.1} parent=31 // pred_check_branch
          %442 = sbr.rel (%p440) target = $region56
        $region55: #{tpu_custom_call.1} parent=31 // pred_region
          _
        $region56: #{tpu_custom_call.1} parent=31 // pred_fallthru
          _
      $region32: #{tpu_custom_call.1} parent=5 // pred_fallthru
        _
      %p443 = scmp.le.s32.totalorder 2, %s17
      // Predicated region
      $region57: #{tpu_custom_call.1} parent=5 // pred_check
        %p444 = pneg %p443
      $region58: #{tpu_custom_call.1} parent=5 // pred_check_branch
        %446 = sbr.rel (%p444) target = $region60
      $region59: #{tpu_custom_call.1} parent=5 // pred_region
        %s447 = ssub.s32 %s17, 2
        // Predicated region
        $region61: #{tpu_custom_call.1} parent=59 // pred_check
          %p448 = pneg %p154
        $region62: #{tpu_custom_call.1} parent=59 // pred_check_branch
          %450 = sbr.rel (%p448) target = $region64
        $region63: #{tpu_custom_call.1} parent=59 // pred_region
          %p451 = scmp.lt.s32.totalorder %s28, 1
          %s452 = scalar_select %p451, %s28, 1
          %s453 = scalar_lea.vmem %s4, %s452
        $region64: #{tpu_custom_call.1} parent=59 // pred_fallthru
          _
      $region60: #{tpu_custom_call.1} parent=5 // pred_fallthru
        _
    $region6: #{tpu_custom_call.1} parent=1 // loop_footer
      %s21 = sadd.s32 1, %s17
    $region7: #{tpu_custom_call.1} parent=1 // loop_footer_branch
      %16 = sbr.rel target = $region3
    $region8: #{tpu_custom_call.1} parent=1 // loop_exit
      _
    %454 = vsyncpa [#allocation5], 1
    %s455 = scalar_lea.sflag [#allocation5], 1
    %456 = vsyncpa %s455, 1
    %457 = vsyncpa [#allocation7], 1
    %s458 = scalar_lea.sflag [#allocation7], 1
    %459 = vsyncpa %s458, 1

</llo_original>
